<compile_context>
chip_gen: v5e
topology: v5e:2x2
jax: 0.10.0
libtpu: 0.0.40
codegen_flags: <defaults>
</compile_context>

<pallas_src>
import functools

import jax
import jax.numpy as jnp
from jax import lax
from jax.experimental import pallas as pl
from jax.experimental.pallas import tpu as pltpu

_MIB = 1024 * 1024


def _vmem_capacity_bytes():
    """Physical VMEM per TensorCore (128 MiB v5e/v6e, 64 MiB v7x)."""
    try:
        info = pltpu.get_tpu_info()
        cap = getattr(info, "vmem_capacity_bytes", None)
        if cap:
            return int(cap)
    except Exception:
        pass
    return 64 * _MIB  # conservative (v7x-sized) fallback


def _pick_tile(n_out, n_in, wdw_budget_bytes):
    """Largest lane-aligned tn_out whose double-buffered f32 W-in + dw-out
    tiles (16 * tn_out * n_in bytes) fit the budget, preferring an even grid
    of >= 2 steps so megacore splits the tiles across both TensorCores."""
    if n_out % 128 != 0:
        return n_out  # full-extent block (still a legal BlockSpec)
    tmax = wdw_budget_bytes // (16 * n_in)          # 2 arrays * 2 bufs * 4 B
    tmax = max(128, (tmax // 128) * 128)
    if n_out >= 256:                                # keep >= 2 grid steps
        tmax = min(tmax, max(128, ((n_out // 2) // 128) * 128))
    tmax = min(tmax, n_out)
    best = None
    t = (tmax // 128) * 128
    while t >= 128:
        if n_out % t == 0:
            if best is None:
                best = t
            if (n_out // t) % 2 == 0:               # even grid -> clean 2-TC split
                return t
        t -= 128
    return best if best is not None else n_out


def _stdp_kernel(x_ref, pre_ref, w_ref, b_ref, v_ref, tpost_ref,
                 spike_ref, dw_ref, tpost_out_ref, v_out_ref,
                 *, decay_post, v_threshold):
    x = x_ref[...]            # (B, N_in)        grid-invariant
    pre_cat = pre_ref[...]    # (2B, N_in)       grid-invariant: [tpre_new ; -x]
    w = w_ref[...]            # (tn_out, N_in)   this tile's weight rows

    # ---- connection: i = x @ W^T + b (contract last dims; no W^T copy) -------
    i = lax.dot_general(x, w, (((1,), (1,)), ((), ())),
                        preferred_element_type=jnp.float32)       # (B, tn_out)
    i = i + b_ref[...]                                            # (1, tn_out) bcast

    # ---- node: hard-reset integrate-and-fire ---------------------------------
    h = v_ref[...] + i
    spike = (h >= v_threshold).astype(jnp.float32)                # (B, tn_out)
    v_out_ref[...] = h * (1.0 - spike)
    spike_ref[...] = spike

    # ---- post-synaptic trace update -------------------------------------------
    tpost = tpost_ref[...] * decay_post + spike                   # (B, tn_out)
    tpost_out_ref[...] = tpost

    # ---- weight update, fused into ONE MXU call -------------------------------
    # [spike ; tpost] (2B, tn_out) contracted over batch against
    # [tpre_new ; -x] (2B, N_in)  ==  spike^T@tpre_new - tpost^T@x.
    post_cat = jnp.concatenate([spike, tpost], axis=0)            # (2B, tn_out)
    m = lax.dot_general(post_cat, pre_cat, (((0,), (0,)), ((), ())),
                        preferred_element_type=jnp.float32)       # (tn_out, N_in)
    dw_ref[...] = jnp.clip(w, -1.0, 1.0) * m


def stdp_forward(x, weight, bias, v, trace_pre, trace_post, *,
                 tau_pre=2.0, tau_post=2.0, v_threshold=1.0, tn_out=None):
    B, n_in = x.shape
    n_out = weight.shape[0]

    vmem_cap = _vmem_capacity_bytes()
    # ~75% of physical VMEM: 96 MiB on v5e/v6e, 48 MiB on v7x.
    vmem_budget = min(int(vmem_cap * 0.75), 112 * _MIB)
    if tn_out is None:
        tn_out = _pick_tile(n_out, n_in, int(vmem_budget * 0.75))
    assert n_out % tn_out == 0, f"tn_out={tn_out} must divide n_out={n_out}"
    grid = (n_out // tn_out,)

    # VMEM estimate from the actual (double-buffered) block sizes.
    est = 4 * (2 * tn_out * n_in          # weight tile (2 bufs)
               + 2 * tn_out * n_in        # dw tile (2 bufs)
               + 2 * B * n_in             # x (resident)
               + 2 * 2 * B * n_in         # pre_cat (resident)
               + 2 * tn_out               # bias tile
               + 2 * 5 * B * tn_out)      # v, tpost in; spike, tpost', v' out
    if est > vmem_budget:
        # TODO(synk): needs the N_in-tiled two-phase variant for this config.
        raise ValueError(
            f"STDP tile footprint {est/_MIB:.1f} MiB exceeds VMEM budget "
            f"{vmem_budget/_MIB:.1f} MiB; N_in tiling not implemented.")
    vmem_limit = vmem_budget

    decay_pre = 1.0 - 1.0 / tau_pre
    decay_post = 1.0 - 1.0 / tau_post

    # Presynaptic trace update is grid-invariant; compute it once here and ship
    # the pre-negated concat so the kernel's dw reduces to a single matmul.
    trace_pre_new = trace_pre * decay_pre + x
    pre_cat = jnp.concatenate([trace_pre_new, -x], axis=0)        # (2B, n_in)

    kernel = functools.partial(
        _stdp_kernel, decay_post=decay_post, v_threshold=v_threshold)

    in_specs = [
        pl.BlockSpec((B, n_in), lambda j: (0, 0)),          # x          (resident)
        pl.BlockSpec((2 * B, n_in), lambda j: (0, 0)),      # [tpre';-x] (resident)
        pl.BlockSpec((tn_out, n_in), lambda j: (j, 0)),     # weight tile
        pl.BlockSpec((1, tn_out), lambda j: (0, j)),        # bias tile
        pl.BlockSpec((B, tn_out), lambda j: (0, j)),        # v tile
        pl.BlockSpec((B, tn_out), lambda j: (0, j)),        # trace_post tile
    ]
    out_specs = (
        pl.BlockSpec((B, tn_out), lambda j: (0, j)),        # spike
        pl.BlockSpec((tn_out, n_in), lambda j: (j, 0)),     # dw (lane-dense)
        pl.BlockSpec((B, tn_out), lambda j: (0, j)),        # trace_post_new
        pl.BlockSpec((B, tn_out), lambda j: (0, j)),        # v_new
    )
    out_shapes = (
        jax.ShapeDtypeStruct((B, n_out), jnp.float32),
        jax.ShapeDtypeStruct((n_out, n_in), jnp.float32),
        jax.ShapeDtypeStruct((B, n_out), jnp.float32),
        jax.ShapeDtypeStruct((B, n_out), jnp.float32),
    )

    spike, dw, trace_post_new, v_new = pl.pallas_call(
        kernel,
        grid=grid,
        out_shape=out_shapes,
        in_specs=in_specs,
        out_specs=out_specs,
        # In-place recurrent state update: v -> v_new, trace_post -> trace_post'.
        # NOTE: donates the v / trace_post buffers -- callers must thread the
        # returned state and must not read the original arrays afterwards.
        input_output_aliases={4: 3, 5: 2},
        compiler_params=pltpu.CompilerParams(
            dimension_semantics=("parallel",),
            vmem_limit_bytes=vmem_limit),
    )(x, pre_cat, weight, bias, v, trace_post)

    return spike, dw, trace_pre_new, trace_post_new, v_new


if __name__ == "__main__":
    B, N_IN, N_OUT = 8, 256, 256
    TAU_PRE, TAU_POST, V_TH = 2.0, 2.0, 1.0

    key = jax.random.PRNGKey(0)
    k_x0, k_x1, k_w, k_b = jax.random.split(key, 4)

    x0 = jax.random.bernoulli(k_x0, p=0.3, shape=(B, N_IN)).astype(jnp.float32)
    x1 = jax.random.bernoulli(k_x1, p=0.3, shape=(B, N_IN)).astype(jnp.float32)

    bound = 1.0 / (N_IN ** 0.5)
    weight = jax.random.uniform(k_w, (N_OUT, N_IN), jnp.float32, -bound, bound)
    bias = jax.random.uniform(k_b, (1, N_OUT), jnp.float32, -bound, bound)

    # Module defaults: traces = 0.0, membrane potential = 0.0.
    v0 = jnp.zeros((B, N_OUT), jnp.float32)
    tpre0 = jnp.zeros((B, N_IN), jnp.float32)
    tpost0 = jnp.zeros((B, N_OUT), jnp.float32)

    # ---- pure-JAX reference (2 timesteps), computed before kernel calls -------
    def ref_step(xt, v, tpre, tpost):
        i = xt @ weight.T + bias
        h = v + i
        spike = (h >= V_TH).astype(jnp.float32)
        v_new = h * (1.0 - spike)
        tpre_new = tpre - tpre / TAU_PRE + xt
        tpost_new = tpost - tpost / TAU_POST + spike
        wc = jnp.clip(weight, -1.0, 1.0)
        dw = wc * (spike.T @ tpre_new) - wc * (tpost_new.T @ xt)
        return spike, dw, tpre_new, tpost_new, v_new

    refs = []
    rv, rtpre, rtpost = v0, tpre0, tpost0
    for xt in (x0, x1):
        rspike, rdw, rtpre, rtpost, rv = ref_step(xt, rv, rtpre, rtpost)
        refs.append((rspike, rdw, rtpre, rtpost, rv))
    refs = jax.block_until_ready(refs)

    # ---- Pallas kernel (2 timesteps, recurrent state threaded through) --------
    outs = []
    kv, ktpre, ktpost = v0, tpre0, tpost0
    for xt in (x0, x1):
        kspike, kdw, ktpre, ktpost, kv = stdp_forward(
            xt, weight, bias, kv, ktpre, ktpost,
            tau_pre=TAU_PRE, tau_post=TAU_POST, v_threshold=V_TH)
        outs.append((kspike, kdw, ktpre, ktpost, kv))
    outs = jax.block_until_ready(outs)

    names = ("spike", "dw", "trace_pre", "trace_post", "v")
    for step, (ref, out) in enumerate(zip(refs, outs)):
        for name, r, o in zip(names, ref, out):
            assert jnp.allclose(o, r, atol=1e-4, rtol=1e-4), (
                f"{name} mismatch at step {step}")

    print("KERNEL_OK")
</pallas_src>

<mosaic_0001>
module attributes {stable_mosaic.version = 11 : i64} {
  func.func @_stdp_kernel(%arg0: i32, %arg1: memref<8x256xf32, #tpu.memory_space<vmem>>, %arg2: memref<16x256xf32, #tpu.memory_space<vmem>>, %arg3: memref<128x256xf32, #tpu.memory_space<vmem>>, %arg4: memref<1x128xf32, #tpu.memory_space<vmem>>, %arg5: memref<8x128xf32, #tpu.memory_space<vmem>>, %arg6: memref<8x128xf32, #tpu.memory_space<vmem>>, %arg7: memref<8x128xf32, #tpu.memory_space<vmem>>, %arg8: memref<128x256xf32, #tpu.memory_space<vmem>>, %arg9: memref<8x128xf32, #tpu.memory_space<vmem>>, %arg10: memref<8x128xf32, #tpu.memory_space<vmem>>) attributes {dimension_semantics = [#tpu.dimension_semantics<parallel>], iteration_bounds = array<i64: 2>, scalar_prefetch = 0 : i64, scratch_operands = 0 : i64, tpu.core_type = #tpu.core_type<tc>, window_params = [{pipeline_mode = #tpu.pipeline_mode<synchronous>, transform_indices = @transform_0, window_bounds = array<i64: 8, 256>}, {pipeline_mode = #tpu.pipeline_mode<synchronous>, transform_indices = @transform_1, window_bounds = array<i64: 16, 256>}, {transform_indices = @transform_2, window_bounds = array<i64: 128, 256>}, {transform_indices = @transform_3, window_bounds = array<i64: 1, 128>}, {transform_indices = @transform_4, window_bounds = array<i64: 8, 128>}, {transform_indices = @transform_5, window_bounds = array<i64: 8, 128>}, {transform_indices = @transform_6, window_bounds = array<i64: 8, 128>}, {transform_indices = @transform_7, window_bounds = array<i64: 128, 256>}, {transform_indices = @transform_8, window_bounds = array<i64: 8, 128>}, {transform_indices = @transform_9, window_bounds = array<i64: 8, 128>}]} {
    %c0 = arith.constant 0 : index
    %c0_0 = arith.constant 0 : index
    %0 = vector.load %arg1[%c0, %c0_0] : memref<8x256xf32, #tpu.memory_space<vmem>>, vector<8x256xf32>
    %c0_1 = arith.constant 0 : index
    %c0_2 = arith.constant 0 : index
    %1 = vector.load %arg2[%c0_1, %c0_2] : memref<16x256xf32, #tpu.memory_space<vmem>>, vector<16x256xf32>
    %c0_3 = arith.constant 0 : index
    %c0_4 = arith.constant 0 : index
    %2 = vector.load %arg3[%c0_3, %c0_4] : memref<128x256xf32, #tpu.memory_space<vmem>>, vector<128x256xf32>
    %cst = arith.constant dense<0.000000e+00> : vector<8x128xf32>
    %3 = tpu.matmul %0, %2, %cst {dimension_numbers = #tpu.dot_dimension_numbers<[1], [1], [0], [0], [0, 0, 1, 0], [], []>} : vector<8x256xf32>, vector<128x256xf32>, vector<8x128xf32> -> vector<8x128xf32>
    %c0_5 = arith.constant 0 : index
    %c0_6 = arith.constant 0 : index
    %4 = vector.load %arg4[%c0_5, %c0_6] : memref<1x128xf32, #tpu.memory_space<vmem>>, vector<1x128xf32>
    %5 = vector.broadcast %4 : vector<1x128xf32> to vector<8x128xf32>
    %6 = arith.addf %3, %5 : vector<8x128xf32>
    %c0_7 = arith.constant 0 : index
    %c0_8 = arith.constant 0 : index
    %7 = vector.load %arg5[%c0_7, %c0_8] : memref<8x128xf32, #tpu.memory_space<vmem>>, vector<8x128xf32>
    %8 = arith.addf %7, %6 : vector<8x128xf32>
    %cst_9 = arith.constant 1.000000e+00 : f32
    %9 = vector.broadcast %cst_9 : f32 to vector<8x128xf32>
    %10 = arith.cmpf oge, %8, %9 : vector<8x128xf32>
    %11 = arith.extui %10 : vector<8x128xi1> to vector<8x128xi32>
    %12 = arith.sitofp %11 : vector<8x128xi32> to vector<8x128xf32>
    %cst_10 = arith.constant 1.000000e+00 : f32
    %13 = vector.broadcast %cst_10 : f32 to vector<8x128xf32>
    %14 = arith.subf %13, %12 : vector<8x128xf32>
    %15 = arith.mulf %8, %14 : vector<8x128xf32>
    %c0_11 = arith.constant 0 : index
    %c0_12 = arith.constant 0 : index
    %16 = vector.load %arg10[%c0_11, %c0_12] : memref<8x128xf32, #tpu.memory_space<vmem>>, vector<8x128xf32>
    tpu.vector_store %arg10[%c0_11, %c0_12], %15 {strides = array<i32>} : memref<8x128xf32, #tpu.memory_space<vmem>>, vector<8x128xf32>,
    %c0_13 = arith.constant 0 : index
    %c0_14 = arith.constant 0 : index
    %17 = vector.load %arg7[%c0_13, %c0_14] : memref<8x128xf32, #tpu.memory_space<vmem>>, vector<8x128xf32>
    tpu.vector_store %arg7[%c0_13, %c0_14], %12 {strides = array<i32>} : memref<8x128xf32, #tpu.memory_space<vmem>>, vector<8x128xf32>,
    %c0_15 = arith.constant 0 : index
    %c0_16 = arith.constant 0 : index
    %18 = vector.load %arg6[%c0_15, %c0_16] : memref<8x128xf32, #tpu.memory_space<vmem>>, vector<8x128xf32>
    %cst_17 = arith.constant 5.000000e-01 : f32
    %19 = vector.broadcast %cst_17 : f32 to vector<8x128xf32>
    %20 = arith.mulf %18, %19 : vector<8x128xf32>
    %21 = arith.addf %20, %12 : vector<8x128xf32>
    %c0_18 = arith.constant 0 : index
    %c0_19 = arith.constant 0 : index
    %22 = vector.load %arg9[%c0_18, %c0_19] : memref<8x128xf32, #tpu.memory_space<vmem>>, vector<8x128xf32>
    tpu.vector_store %arg9[%c0_18, %c0_19], %21 {strides = array<i32>} : memref<8x128xf32, #tpu.memory_space<vmem>>, vector<8x128xf32>,
    %23 = tpu.concatenate %12, %21 in 0 : vector<8x128xf32>, vector<8x128xf32> -> vector<16x128xf32>
    %cst_20 = arith.constant dense<0.000000e+00> : vector<128x256xf32>
    %24 = tpu.matmul %23, %1, %cst_20 {dimension_numbers = #tpu.dot_dimension_numbers<[0], [0], [1], [1], [0, 1, 1, 1], [], []>} : vector<16x128xf32>, vector<16x256xf32>, vector<128x256xf32> -> vector<128x256xf32>
    %cst_21 = arith.constant -1.000000e+00 : f32
    %cst_22 = arith.constant 1.000000e+00 : f32
    %25 = vector.broadcast %cst_21 : f32 to vector<128x256xf32>
    %26 = arith.maximumf %25, %2 : vector<128x256xf32>
    %27 = vector.broadcast %cst_22 : f32 to vector<128x256xf32>
    %28 = arith.minimumf %27, %26 : vector<128x256xf32>
    %29 = arith.mulf %28, %24 : vector<128x256xf32>
    %c0_23 = arith.constant 0 : index
    %c0_24 = arith.constant 0 : index
    %30 = vector.load %arg8[%c0_23, %c0_24] : memref<128x256xf32, #tpu.memory_space<vmem>>, vector<128x256xf32>
    tpu.vector_store %arg8[%c0_23, %c0_24], %29 {strides = array<i32>} : memref<128x256xf32, #tpu.memory_space<vmem>>, vector<128x256xf32>,
    return
  }
  func.func @transform_0(%arg0: i32) -> (i32, i32) {
    %c0_i32 = arith.constant 0 : i32
    %c0_i32_0 = arith.constant 0 : i32
    %c0_i32_1 = arith.constant 0 : i32
    return %c0_i32, %c0_i32_0 : i32, i32
  }
  func.func @transform_1(%arg0: i32) -> (i32, i32) {
    %c0_i32 = arith.constant 0 : i32
    %c0_i32_0 = arith.constant 0 : i32
    %c0_i32_1 = arith.constant 0 : i32
    return %c0_i32, %c0_i32_0 : i32, i32
  }
  func.func @transform_2(%arg0: i32) -> (i32, i32) {
    %c0_i32 = arith.constant 0 : i32
    %c0_i32_0 = arith.constant 0 : i32
    return %arg0, %c0_i32 : i32, i32
  }
  func.func @transform_3(%arg0: i32) -> (i32, i32) {
    %c0_i32 = arith.constant 0 : i32
    %c0_i32_0 = arith.constant 0 : i32
    return %c0_i32, %arg0 : i32, i32
  }
  func.func @transform_4(%arg0: i32) -> (i32, i32) {
    %c0_i32 = arith.constant 0 : i32
    %c0_i32_0 = arith.constant 0 : i32
    return %c0_i32, %arg0 : i32, i32
  }
  func.func @transform_5(%arg0: i32) -> (i32, i32) {
    %c0_i32 = arith.constant 0 : i32
    %c0_i32_0 = arith.constant 0 : i32
    return %c0_i32, %arg0 : i32, i32
  }
  func.func @transform_6(%arg0: i32) -> (i32, i32) {
    %c0_i32 = arith.constant 0 : i32
    %c0_i32_0 = arith.constant 0 : i32
    return %c0_i32, %arg0 : i32, i32
  }
  func.func @transform_7(%arg0: i32) -> (i32, i32) {
    %c0_i32 = arith.constant 0 : i32
    %c0_i32_0 = arith.constant 0 : i32
    return %arg0, %c0_i32 : i32, i32
  }
  func.func @transform_8(%arg0: i32) -> (i32, i32) {
    %c0_i32 = arith.constant 0 : i32
    %c0_i32_0 = arith.constant 0 : i32
    return %c0_i32, %arg0 : i32, i32
  }
  func.func @transform_9(%arg0: i32) -> (i32, i32) {
    %c0_i32 = arith.constant 0 : i32
    %c0_i32_0 = arith.constant 0 : i32
    return %c0_i32, %arg0 : i32, i32
  }
}

</mosaic_0001>

<llo_original>
// kernel: tpu_custom_call.1
$region0: #{tpu_custom_call.1}
  #allocation0 [shape = 'u32[]', space=smem, size = 0x4, offset = 0x4, fixed_abs, tag = 'smem constant byte address 0x4 - core index']
  #allocation1 [shape = 'u32[72,128]{1,0:T(1,128)}', space=vmem, size = 0x9000, scoped, tag = 'internal scratch']
  %s0 = inlined_call_operand.vmem [shape: f32[8,256], index: 0, kind: input, shape index: {}]
  %s1 = inlined_call_operand.vmem [shape: f32[16,256], index: 1, kind: input, shape index: {}]
  %s2 = inlined_call_operand.hbm [shape: f32[256,256], index: 2, kind: input, shape index: {}]
  %s3 = inlined_call_operand.hbm [shape: f32[1,256], index: 3, kind: input, shape index: {}]
  %s4 = inlined_call_operand.hbm [shape: f32[8,256], index: 4, kind: input, shape index: {}, may-alias: {4,9}]
  %s5 = inlined_call_operand.hbm [shape: f32[8,256], index: 5, kind: input, shape index: {}, may-alias: {5,8}]
  %s6 = inlined_call_operand.hbm [shape: f32[8,256], index: 6, kind: output, shape index: {0}]
  %s7 = inlined_call_operand.hbm [shape: f32[256,256], index: 7, kind: output, shape index: {1}]
  %s8 = inlined_call_operand.hbm [shape: f32[8,256], index: 8, kind: output, shape index: {2}, may-alias: {5,8}]
  %s9 = inlined_call_operand.hbm [shape: f32[8,256], index: 9, kind: output, shape index: {3}, may-alias: {4,9}]
  %10 = xla_tuple %s6, %s7, %s8, %s9
  %s11 = sld [smem:[#allocation0]]
  $region97: #{tpu_custom_call.1} parent=0
    _
  %s13 = ssub.s32 1, %s11
  %s14 = scalar_select 0, %s13, %s11
  $region1: #{tpu_custom_call.1} parent=0
    #allocation2 [shape = 'u8[262144]{0}', space=vmem, size = 0x40000, scoped, tag = 'input window, operand 2']
    #allocation3 [shape = 's32[2]{0}', space=sflag, size = 0x8, scoped, tag = 'scoped memory for tpu_custom_call.1']
    #allocation4 [shape = 's32[2]{0}', space=sflag, size = 0x8, scoped, tag = 'scoped memory for tpu_custom_call.1']
    #allocation5 [shape = 'u8[1024]{0}', space=vmem, size = 0x400, scoped, tag = 'input window, operand 3']
    #allocation6 [shape = 's32[2]{0}', space=sflag, size = 0x8, scoped, tag = 'scoped memory for tpu_custom_call.1']
    #allocation7 [shape = 'u8[8192]{0}', space=vmem, size = 0x2000, scoped, tag = 'input window, operand 4']
    #allocation8 [shape = 'u8[8192]{0}', space=vmem, size = 0x2000, scoped, tag = 'input window, operand 5']
    #allocation9 [shape = 's32[2]{0}', space=sflag, size = 0x8, scoped, tag = 'scoped memory for tpu_custom_call.1']
    #allocation10 [shape = 'u8[8192]{0}', space=vmem, size = 0x2000, scoped, tag = 'output window, operand 0']
    #allocation11 [shape = 'u8[262144]{0}', space=vmem, size = 0x40000, scoped, tag = 'output window, operand 1']
    #allocation12 [shape = 's32[2]{0}', space=sflag, size = 0x8, scoped, tag = 'scoped memory for tpu_custom_call.1']
    #allocation13 [shape = 'u8[8192]{0}', space=vmem, size = 0x2000, scoped, tag = 'output window, operand 2']
    #allocation14 [shape = 'u8[8192]{0}', space=vmem, size = 0x2000, scoped, tag = 'output window, operand 3']
    #allocation15 [shape = 's32[2]{0}', space=sflag, size = 0x8, scoped, tag = 'scoped memory for tpu_custom_call.1']
    %15 = vsyncpa [#allocation3], 0
    %s16 = scalar_lea.sflag [#allocation3], 1
    %17 = vsyncpa %s16, 0
    %18 = vsyncpa [#allocation6], 0
    %s19 = scalar_lea.sflag [#allocation6], 1
    %20 = vsyncpa %s19, 0
    %21 = vsyncpa [#allocation9], 0
    %s22 = scalar_lea.sflag [#allocation9], 1
    %23 = vsyncpa %s22, 0
    %24 = vsyncpa [#allocation4], 0
    %s25 = scalar_lea.sflag [#allocation4], 1
    %26 = vsyncpa %s25, 0
    %27 = vsyncpa [#allocation12], 0
    %s28 = scalar_lea.sflag [#allocation12], 1
    %29 = vsyncpa %s28, 0
    %30 = vsyncpa [#allocation15], 0
    %s31 = scalar_lea.sflag [#allocation15], 1
    %32 = vsyncpa %s31, 0
    loop: start=0, step=1, limit=4
    $region2: #{tpu_custom_call.1} parent=1 // loop_pre_header
      _
    $region3: #{tpu_custom_call.1} parent=1 // loop_header
      %s34 = sphi 0, %s38
      %p35 = scmp.ge.s32.totalorder %s34, 4
      %s42 = sphi 0, %s42
      %s44 = sphi 0, %s42
      %s45 = sphi 0, %s44
      %s59 = sphi 0, %s45
      %s63 = sphi 0, %s63
      %s65 = sphi 0, %s63
      %s66 = sphi 0, %s65
      %s80 = sphi 0, %s66
      %s86 = sphi 0, %s88
      %s89 = sphi 0, %s86
      %s90 = sphi 0, %s89
      %s106 = sphi 0, %s90
      %s112 = sphi 0, %s114
      %s115 = sphi 0, %s112
      %s116 = sphi 0, %s115
      %s132 = sphi 0, %s116
      %s138 = sphi 0, %s140
      %s141 = sphi 0, %s138
      %s142 = sphi 0, %s141
      %s158 = sphi 0, %s142
      %s164 = sphi 0, %s166
      %s167 = sphi 0, %s164
      %s168 = sphi 0, %s167
      %s184 = sphi 0, %s168
      %s190 = sphi 0, %s192
      %s193 = sphi 0, %s190
      %s194 = sphi 0, %s193
      %s210 = sphi 0, %s194
      %s216 = sphi 0, %s218
      %s219 = sphi 0, %s216
      %s220 = sphi 0, %s219
      %s236 = sphi 0, %s220
      %s242 = sphi 0, %s244
      %s245 = sphi 0, %s242
      %s246 = sphi 0, %s245
      %s262 = sphi 0, %s246
      %s268 = sphi 0, %s270
      %s271 = sphi 0, %s268
      %s272 = sphi 0, %s271
      %s288 = sphi 0, %s272
    $region4: #{tpu_custom_call.1} parent=1 // loop_header_branch
      %37 = sbr.rel (%p35) target = $region8
    $region5: #{tpu_custom_call.1} parent=1 // loop_body
      %s39 = ssub.s32 %s34, 1
      %s40 = ssub.s32 %s34, 2
      %s41 = sadd.s32 %s34, 1
      %s43 = sadd.s32 %s42, 1
      %p46 = scmp.eq.s32.totalorder %s34, 1
      %p47 = scmp.ne.s32.totalorder %s42, %s44
      %p48 = scmp.eq.s32.totalorder %s34, 0
      %p49 = por %p47, %p48
      %p50 = scmp.ne.s32.totalorder %s42, %s44
      %p51 = scmp.eq.s32.totalorder %s39, 1
      %p52 = por %p50, %p51
      %p53 = scmp.ne.s32.totalorder %s44, %s45
      %p54 = scmp.eq.s32.totalorder %s39, 0
      %p55 = por %p53, %p54
      %p56 = scmp.ne.s32.totalorder %s44, %s45
      %p57 = scmp.eq.s32.totalorder %s40, 1
      %p58 = por %p56, %p57
      %p60 = scmp.ne.s32.totalorder %s45, %s59
      %p61 = scmp.eq.s32.totalorder %s40, 0
      %p62 = por %p60, %p61
      %s64 = sadd.s32 %s63, 1
      %p67 = scmp.eq.s32.totalorder %s34, 1
      %p68 = scmp.ne.s32.totalorder %s63, %s65
      %p69 = scmp.eq.s32.totalorder %s34, 0
      %p70 = por %p68, %p69
      %p71 = scmp.ne.s32.totalorder %s63, %s65
      %p72 = scmp.eq.s32.totalorder %s39, 1
      %p73 = por %p71, %p72
      %p74 = scmp.ne.s32.totalorder %s65, %s66
      %p75 = scmp.eq.s32.totalorder %s39, 0
      %p76 = por %p74, %p75
      %p77 = scmp.ne.s32.totalorder %s65, %s66
      %p78 = scmp.eq.s32.totalorder %s40, 1
      %p79 = por %p77, %p78
      %p81 = scmp.ne.s32.totalorder %s66, %s80
      %p82 = scmp.eq.s32.totalorder %s40, 0
      %p83 = por %p81, %p82
      %s84 = ssub.s32 %s34, %s41
      %p85 = scmp.eq.s32.totalorder %s84, 0
      %s87 = sadd.s32 %s86, 1
      %s88 = scalar_select %p85, %s86, %s87
      %p91 = pneg %p85
      %p92 = scmp.eq.s32.totalorder %s34, 1
      %p93 = por %p91, %p92
      %p94 = scmp.ne.s32.totalorder %s86, %s89
      %p95 = scmp.eq.s32.totalorder %s34, 0
      %p96 = por %p94, %p95
      %p97 = scmp.ne.s32.totalorder %s86, %s89
      %p98 = scmp.eq.s32.totalorder %s39, 1
      %p99 = por %p97, %p98
      %p100 = scmp.ne.s32.totalorder %s89, %s90
      %p101 = scmp.eq.s32.totalorder %s39, 0
      %p102 = por %p100, %p101
      %p103 = scmp.ne.s32.totalorder %s89, %s90
      %p104 = scmp.eq.s32.totalorder %s40, 1
      %p105 = por %p103, %p104
      %p107 = scmp.ne.s32.totalorder %s90, %s106
      %p108 = scmp.eq.s32.totalorder %s40, 0
      %p109 = por %p107, %p108
      %s110 = ssub.s32 %s34, %s41
      %p111 = scmp.eq.s32.totalorder %s110, 0
      %s113 = sadd.s32 %s112, 1
      %s114 = scalar_select %p111, %s112, %s113
      %p117 = pneg %p111
      %p118 = scmp.eq.s32.totalorder %s34, 1
      %p119 = por %p117, %p118
      %p120 = scmp.ne.s32.totalorder %s112, %s115
      %p121 = scmp.eq.s32.totalorder %s34, 0
      %p122 = por %p120, %p121
      %p123 = scmp.ne.s32.totalorder %s112, %s115
      %p124 = scmp.eq.s32.totalorder %s39, 1
      %p125 = por %p123, %p124
      %p126 = scmp.ne.s32.totalorder %s115, %s116
      %p127 = scmp.eq.s32.totalorder %s39, 0
      %p128 = por %p126, %p127
      %p129 = scmp.ne.s32.totalorder %s115, %s116
      %p130 = scmp.eq.s32.totalorder %s40, 1
      %p131 = por %p129, %p130
      %p133 = scmp.ne.s32.totalorder %s116, %s132
      %p134 = scmp.eq.s32.totalorder %s40, 0
      %p135 = por %p133, %p134
      %s136 = ssub.s32 %s34, %s41
      %p137 = scmp.eq.s32.totalorder %s136, 0
      %s139 = sadd.s32 %s138, 1
      %s140 = scalar_select %p137, %s138, %s139
      %p143 = pneg %p137
      %p144 = scmp.eq.s32.totalorder %s34, 1
      %p145 = por %p143, %p144
      %p146 = scmp.ne.s32.totalorder %s138, %s141
      %p147 = scmp.eq.s32.totalorder %s34, 0
      %p148 = por %p146, %p147
      %p149 = scmp.ne.s32.totalorder %s138, %s141
      %p150 = scmp.eq.s32.totalorder %s39, 1
      %p151 = por %p149, %p150
      %p152 = scmp.ne.s32.totalorder %s141, %s142
      %p153 = scmp.eq.s32.totalorder %s39, 0
      %p154 = por %p152, %p153
      %p155 = scmp.ne.s32.totalorder %s141, %s142
      %p156 = scmp.eq.s32.totalorder %s40, 1
      %p157 = por %p155, %p156
      %p159 = scmp.ne.s32.totalorder %s142, %s158
      %p160 = scmp.eq.s32.totalorder %s40, 0
      %p161 = por %p159, %p160
      %s162 = ssub.s32 %s34, %s41
      %p163 = scmp.eq.s32.totalorder %s162, 0
      %s165 = sadd.s32 %s164, 1
      %s166 = scalar_select %p163, %s164, %s165
      %p169 = pneg %p163
      %p170 = scmp.eq.s32.totalorder %s34, 1
      %p171 = por %p169, %p170
      %p172 = scmp.ne.s32.totalorder %s164, %s167
      %p173 = scmp.eq.s32.totalorder %s34, 0
      %p174 = por %p172, %p173
      %p175 = scmp.ne.s32.totalorder %s164, %s167
      %p176 = scmp.eq.s32.totalorder %s39, 1
      %p177 = por %p175, %p176
      %p178 = scmp.ne.s32.totalorder %s167, %s168
      %p179 = scmp.eq.s32.totalorder %s39, 0
      %p180 = por %p178, %p179
      %p181 = scmp.ne.s32.totalorder %s167, %s168
      %p182 = scmp.eq.s32.totalorder %s40, 1
      %p183 = por %p181, %p182
      %p185 = scmp.ne.s32.totalorder %s168, %s184
      %p186 = scmp.eq.s32.totalorder %s40, 0
      %p187 = por %p185, %p186
      %s188 = ssub.s32 %s34, %s41
      %p189 = scmp.eq.s32.totalorder %s188, 0
      %s191 = sadd.s32 %s190, 1
      %s192 = scalar_select %p189, %s190, %s191
      %p195 = pneg %p189
      %p196 = scmp.eq.s32.totalorder %s34, 1
      %p197 = por %p195, %p196
      %p198 = scmp.ne.s32.totalorder %s190, %s193
      %p199 = scmp.eq.s32.totalorder %s34, 0
      %p200 = por %p198, %p199
      %p201 = scmp.ne.s32.totalorder %s190, %s193
      %p202 = scmp.eq.s32.totalorder %s39, 1
      %p203 = por %p201, %p202
      %p204 = scmp.ne.s32.totalorder %s193, %s194
      %p205 = scmp.eq.s32.totalorder %s39, 0
      %p206 = por %p204, %p205
      %p207 = scmp.ne.s32.totalorder %s193, %s194
      %p208 = scmp.eq.s32.totalorder %s40, 1
      %p209 = por %p207, %p208
      %p211 = scmp.ne.s32.totalorder %s194, %s210
      %p212 = scmp.eq.s32.totalorder %s40, 0
      %p213 = por %p211, %p212
      %s214 = ssub.s32 %s34, %s41
      %p215 = scmp.eq.s32.totalorder %s214, 0
      %s217 = sadd.s32 %s216, 1
      %s218 = scalar_select %p215, %s216, %s217
      %p221 = pneg %p215
      %p222 = scmp.eq.s32.totalorder %s34, 1
      %p223 = por %p221, %p222
      %p224 = scmp.ne.s32.totalorder %s216, %s219
      %p225 = scmp.eq.s32.totalorder %s34, 0
      %p226 = por %p224, %p225
      %p227 = scmp.ne.s32.totalorder %s216, %s219
      %p228 = scmp.eq.s32.totalorder %s39, 1
      %p229 = por %p227, %p228
      %p230 = scmp.ne.s32.totalorder %s219, %s220
      %p231 = scmp.eq.s32.totalorder %s39, 0
      %p232 = por %p230, %p231
      %p233 = scmp.ne.s32.totalorder %s219, %s220
      %p234 = scmp.eq.s32.totalorder %s40, 1
      %p235 = por %p233, %p234
      %p237 = scmp.ne.s32.totalorder %s220, %s236
      %p238 = scmp.eq.s32.totalorder %s40, 0
      %p239 = por %p237, %p238
      %s240 = ssub.s32 %s34, %s41
      %p241 = scmp.eq.s32.totalorder %s240, 0
      %s243 = sadd.s32 %s242, 1
      %s244 = scalar_select %p241, %s242, %s243
      %p247 = pneg %p241
      %p248 = scmp.eq.s32.totalorder %s34, 1
      %p249 = por %p247, %p248
      %p250 = scmp.ne.s32.totalorder %s242, %s245
      %p251 = scmp.eq.s32.totalorder %s34, 0
      %p252 = por %p250, %p251
      %p253 = scmp.ne.s32.totalorder %s242, %s245
      %p254 = scmp.eq.s32.totalorder %s39, 1
      %p255 = por %p253, %p254
      %p256 = scmp.ne.s32.totalorder %s245, %s246
      %p257 = scmp.eq.s32.totalorder %s39, 0
      %p258 = por %p256, %p257
      %p259 = scmp.ne.s32.totalorder %s245, %s246
      %p260 = scmp.eq.s32.totalorder %s40, 1
      %p261 = por %p259, %p260
      %p263 = scmp.ne.s32.totalorder %s246, %s262
      %p264 = scmp.eq.s32.totalorder %s40, 0
      %p265 = por %p263, %p264
      %s266 = ssub.s32 %s34, %s41
      %p267 = scmp.eq.s32.totalorder %s266, 0
      %s269 = sadd.s32 %s268, 1
      %s270 = scalar_select %p267, %s268, %s269
      %p273 = pneg %p267
      %p274 = scmp.eq.s32.totalorder %s34, 1
      %p275 = por %p273, %p274
      %p276 = scmp.ne.s32.totalorder %s268, %s271
      %p277 = scmp.eq.s32.totalorder %s34, 0
      %p278 = por %p276, %p277
      %p279 = scmp.ne.s32.totalorder %s268, %s271
      %p280 = scmp.eq.s32.totalorder %s39, 1
      %p281 = por %p279, %p280
      %p282 = scmp.ne.s32.totalorder %s271, %s272
      %p283 = scmp.eq.s32.totalorder %s39, 0
      %p284 = por %p282, %p283
      %p285 = scmp.ne.s32.totalorder %s271, %s272
      %p286 = scmp.eq.s32.totalorder %s40, 1
      %p287 = por %p285, %p286
      %p289 = scmp.ne.s32.totalorder %s272, %s288
      %p290 = scmp.eq.s32.totalorder %s40, 0
      %p291 = por %p289, %p290
      %p292 = scmp.le.s32.totalorder 1, %s34
      %p293 = scmp.lt.s32.totalorder %s34, 3
      %p294 = pnand %p292, %p293
      %p295 = pneg %p294
      // Predicated region
      $region9: #{tpu_custom_call.1} parent=5 // pred_check
        _
      $region10: #{tpu_custom_call.1} parent=5 // pred_check_branch
        %297 = sbr.rel (%p294) target = $region12
      $region11: #{tpu_custom_call.1} parent=5 // pred_region
        %s298 = ssub.s32 %s34, 1
        // Predicated region
        $region13: #{tpu_custom_call.1} parent=11 // pred_check
          %p299 = pneg %p55
        $region14: #{tpu_custom_call.1} parent=11 // pred_check_branch
          %301 = sbr.rel (%p299) target = $region16
        $region15: #{tpu_custom_call.1} parent=11 // pred_region
          _
        $region16: #{tpu_custom_call.1} parent=11 // pred_fallthru
          _
        // Predicated region
        $region17: #{tpu_custom_call.1} parent=11 // pred_check
          %p302 = pneg %p76
        $region18: #{tpu_custom_call.1} parent=11 // pred_check_branch
          %304 = sbr.rel (%p302) target = $region20
        $region19: #{tpu_custom_call.1} parent=11 // pred_region
          _
        $region20: #{tpu_custom_call.1} parent=11 // pred_fallthru
          _
      $region12: #{tpu_custom_call.1} parent=5 // pred_fallthru
        _
      %p305 = scmp.lt.s32.totalorder %s34, 2
      // Predicated region
      $region21: #{tpu_custom_call.1} parent=5 // pred_check
        %p306 = pneg %p305
      $region22: #{tpu_custom_call.1} parent=5 // pred_check_branch
        %308 = sbr.rel (%p306) target = $region24
      $region23: #{tpu_custom_call.1} parent=5 // pred_region
        // Predicated region
        $region25: #{tpu_custom_call.1} parent=23 // pred_check
          %p309 = pneg %p96
        $region26: #{tpu_custom_call.1} parent=23 // pred_check_branch
          %311 = sbr.rel (%p309) target = $region28
        $region27: #{tpu_custom_call.1} parent=23 // pred_region
          %s312 = sand.u32 %s86, 1
          %s313 = scalar_lea.sflag [#allocation3], %s312
          %s314 = sand.u32 %s86, 1
          %s315 = smul.addr %s314, 256
          %s316 = scalar_lea.vmem [#allocation2], %s315
          %s317 = smul.u32 16, %s34
          %319 = vsyncadd %s313, 0
          %s320 = smul.addr %s317, 2
          %s321 = smul.addr %s320, 8
          %s322 = scalar_lea.hbm %s2, %s321
          %s323 = sshll.u32 %s322, 4
          %s324 = int_to_ptr.hbm [resolvable:$true] %s323
          %s325 = sshll.u32 %s316, 4
          %s326 = int_to_ptr.vmem [resolvable:$true] %s325
          %331 = dma.hbm_to_vmem [thread:$0]  %s324, 4096, %s326, %s313, 256, 256, 16
        $region28: #{tpu_custom_call.1} parent=23 // pred_fallthru
          _
        // Predicated region
        $region29: #{tpu_custom_call.1} parent=23 // pred_check
          %p332 = pneg %p122
        $region30: #{tpu_custom_call.1} parent=23 // pred_check_branch
          %334 = sbr.rel (%p332) target = $region32
        $region31: #{tpu_custom_call.1} parent=23 // pred_region
          %s335 = sand.u32 %s34, 1
          %s336 = scalar_lea.sflag [#allocation6], %s335
          %s337 = sand.u32 %s112, 1
          %s338 = scalar_lea.vmem [#allocation5], %s337
          %340 = vsyncadd %s336, 0
          %s341 = scalar_lea.hbm %s3, %s34
          %s343 = sshll.u32 %s341, 4
          %s344 = int_to_ptr.hbm [resolvable:$true] %s343
          %s345 = sshll.u32 %s338, 4
          %s346 = int_to_ptr.vmem [resolvable:$true] %s345
          %348 = dma.hbm_to_vmem [thread:$0]  %s344, 16, %s346, %s336
        $region32: #{tpu_custom_call.1} parent=23 // pred_fallthru
          _
        // Predicated region
        $region33: #{tpu_custom_call.1} parent=23 // pred_check
          %p349 = pneg %p148
        $region34: #{tpu_custom_call.1} parent=23 // pred_check_branch
          %351 = sbr.rel (%p349) target = $region36
        $region35: #{tpu_custom_call.1} parent=23 // pred_region
          %s352 = sand.u32 %s34, 1
          %s353 = scalar_lea.sflag [#allocation6], %s352
          %s354 = sand.u32 %s138, 1
          %s355 = smul.addr %s354, 8
          %s356 = scalar_lea.vmem [#allocation7], %s355
          %358 = vsyncadd %s353, 0
          %s359 = smul.addr %s34, 8
          %s360 = scalar_lea.hbm %s4, %s359
          %s362 = sshll.u32 %s360, 4
          %s363 = int_to_ptr.hbm [resolvable:$true] %s362
          %s364 = sshll.u32 %s356, 4
          %s365 = int_to_ptr.vmem [resolvable:$true] %s364
          %367 = dma.hbm_to_vmem [thread:$0]  %s363, 128, %s365, %s353
        $region36: #{tpu_custom_call.1} parent=23 // pred_fallthru
          _
        // Predicated region
        $region37: #{tpu_custom_call.1} parent=23 // pred_check
          %p368 = pneg %p174
        $region38: #{tpu_custom_call.1} parent=23 // pred_check_branch
          %370 = sbr.rel (%p368) target = $region40
        $region39: #{tpu_custom_call.1} parent=23 // pred_region
          %s371 = sand.u32 %s164, 1
          %s372 = scalar_lea.sflag [#allocation9], %s371
          %s373 = sand.u32 %s164, 1
          %s374 = smul.addr %s373, 8
          %s375 = scalar_lea.vmem [#allocation8], %s374
          %377 = vsyncadd %s372, 0
          %s378 = smul.addr %s34, 8
          %s379 = scalar_lea.hbm %s5, %s378
          %s381 = sshll.u32 %s379, 4
          %s382 = int_to_ptr.hbm [resolvable:$true] %s381
          %s383 = sshll.u32 %s375, 4
          %s384 = int_to_ptr.vmem [resolvable:$true] %s383
          %386 = dma.hbm_to_vmem [thread:$0]  %s382, 128, %s384, %s372
        $region40: #{tpu_custom_call.1} parent=23 // pred_fallthru
          _
      $region24: #{tpu_custom_call.1} parent=5 // pred_fallthru
        _
      %p387 = scmp.le.s32.totalorder 1, %s34
      %p388 = scmp.lt.s32.totalorder %s34, 3
      %p389 = pnand %p387, %p388
      %p390 = pneg %p389
      // Predicated region
      $region41: #{tpu_custom_call.1} parent=5 // pred_check
        _
      $region42: #{tpu_custom_call.1} parent=5 // pred_check_branch
        %392 = sbr.rel (%p389) target = $region44
      $region43: #{tpu_custom_call.1} parent=5 // pred_region
        %s393 = ssub.s32 %s34, 1
        %s394 = sand.u32 %s89, 1
        %s395 = scalar_lea.sflag [#allocation3], %s394
        %s396 = sand.u32 %s89, 1
        %s397 = smul.addr %s396, 256
        %s398 = scalar_lea.vmem [#allocation2], %s397
        // Predicated region
        $region45: #{tpu_custom_call.1} parent=43 // pred_check
          %p399 = pneg %p102
        $region46: #{tpu_custom_call.1} parent=43 // pred_check_branch
          %401 = sbr.rel (%p399) target = $region48
        $region47: #{tpu_custom_call.1} parent=43 // pred_region
          %403 = dma.done %s395, 4096
        $region48: #{tpu_custom_call.1} parent=43 // pred_fallthru
          _
        %s404 = sand.u32 %s39, 1
        %s405 = scalar_lea.sflag [#allocation6], %s404
        %s406 = sand.u32 %s115, 1
        %s407 = scalar_lea.vmem [#allocation5], %s406
        // Predicated region
        $region49: #{tpu_custom_call.1} parent=43 // pred_check
          %p408 = pneg %p128
        $region50: #{tpu_custom_call.1} parent=43 // pred_check_branch
          %410 = sbr.rel (%p408) target = $region52
        $region51: #{tpu_custom_call.1} parent=43 // pred_region
          %412 = dma.done %s405, 16
        $region52: #{tpu_custom_call.1} parent=43 // pred_fallthru
          _
        %s413 = sand.u32 %s39, 1
        %s414 = scalar_lea.sflag [#allocation6], %s413
        %s415 = sand.u32 %s141, 1
        %s416 = smul.addr %s415, 8
        %s417 = scalar_lea.vmem [#allocation7], %s416
        // Predicated region
        $region53: #{tpu_custom_call.1} parent=43 // pred_check
          %p418 = pneg %p154
        $region54: #{tpu_custom_call.1} parent=43 // pred_check_branch
          %420 = sbr.rel (%p418) target = $region56
        $region55: #{tpu_custom_call.1} parent=43 // pred_region
          %422 = dma.done %s414, 128
        $region56: #{tpu_custom_call.1} parent=43 // pred_fallthru
          _
        %s423 = sand.u32 %s167, 1
        %s424 = scalar_lea.sflag [#allocation9], %s423
        %s425 = sand.u32 %s167, 1
        %s426 = smul.addr %s425, 8
        %s427 = scalar_lea.vmem [#allocation8], %s426
        // Predicated region
        $region57: #{tpu_custom_call.1} parent=43 // pred_check
          %p428 = pneg %p180
        $region58: #{tpu_custom_call.1} parent=43 // pred_check_branch
          %430 = sbr.rel (%p428) target = $region60
        $region59: #{tpu_custom_call.1} parent=43 // pred_region
          %432 = dma.done %s424, 128
        $region60: #{tpu_custom_call.1} parent=43 // pred_fallthru
          _
        %p433 = pneg %p55
        %p434 = pneg %p52
        %p435 = pneg %p76
        %p436 = pneg %p73
        %s437 = sand.u32 %s89, 1
        %s438 = scalar_lea.sflag [#allocation3], %s437
        %s439 = sand.u32 %s89, 1
        %s440 = smul.addr %s439, 256
        %s441 = scalar_lea.vmem [#allocation2], %s440
        %p442 = pneg %p102
        %p443 = pneg %p99
        %s444 = sand.u32 %s39, 1
        %s445 = scalar_lea.sflag [#allocation6], %s444
        %s446 = sand.u32 %s115, 1
        %s447 = scalar_lea.vmem [#allocation5], %s446
        %p448 = pneg %p128
        %p449 = pneg %p125
        %s450 = sand.u32 %s39, 1
        %s451 = scalar_lea.sflag [#allocation6], %s450
        %s452 = sand.u32 %s141, 1
        %s453 = smul.addr %s452, 8
        %s454 = scalar_lea.vmem [#allocation7], %s453
        %p455 = pneg %p154
        %p456 = pneg %p151
        %s457 = sand.u32 %s167, 1
        %s458 = scalar_lea.sflag [#allocation9], %s457
        %s459 = sand.u32 %s167, 1
        %s460 = smul.addr %s459, 8
        %s461 = scalar_lea.vmem [#allocation8], %s460
        %p462 = pneg %p180
        %p463 = pneg %p177
        %p464 = pneg %p206
        %p465 = pneg %p203
        %s466 = sand.u32 %s193, 1
        %s467 = scalar_lea.sflag [#allocation4], %s466
        %s468 = sand.u32 %s193, 1
        %s469 = smul.addr %s468, 8
        %s470 = scalar_lea.vmem [#allocation10], %s469
        %p471 = pneg %p232
        %p472 = pneg %p229
        %s473 = sand.u32 %s39, 1
        %s474 = scalar_lea.sflag [#allocation12], %s473
        %s475 = sand.u32 %s219, 1
        %s476 = smul.addr %s475, 256
        %s477 = scalar_lea.vmem [#allocation11], %s476
        %p478 = pneg %p258
        %p479 = pneg %p255
        %s480 = sand.u32 %s39, 1
        %s481 = scalar_lea.sflag [#allocation12], %s480
        %s482 = sand.u32 %s245, 1
        %s483 = smul.addr %s482, 8
        %s484 = scalar_lea.vmem [#allocation13], %s483
        %p485 = pneg %p284
        %p486 = pneg %p281
        %s487 = sand.u32 %s271, 1
        %s488 = scalar_lea.sflag [#allocation15], %s487
        %s489 = sand.u32 %s271, 1
        %s490 = smul.addr %s489, 8
        %s491 = scalar_lea.vmem [#allocation14], %s490
        %s492 = smul.u32 16, %s39
        %s493 = smul.u32 16, %s39
        %v494 = vld [vmem:[%s0] sm:$0xff]
        %v495 = vld [vmem:[%s0 + $0x8] sm:$0xff]
        %v496 = vld [vmem:[%s1] sm:$0xff]
        %v497 = vld [vmem:[%s1 + $0x8] sm:$0xff]
        %v498 = vld [vmem:[%s1 + $0x10] sm:$0xff]
        %v499 = vld [vmem:[%s1 + $0x18] sm:$0xff]
        %v500 = vld [vmem:[%s398] sm:$0xff]
        %v501 = vld [vmem:[%s398 + $0x8] sm:$0xff]
        %v502 = vld [vmem:[%s398 + $0x10] sm:$0xff]
        %v503 = vld [vmem:[%s398 + $0x18] sm:$0xff]
        %v504 = vld [vmem:[%s398 + $0x20] sm:$0xff]
        %v505 = vld [vmem:[%s398 + $0x28] sm:$0xff]
        %v506 = vld [vmem:[%s398 + $0x30] sm:$0xff]
        %v507 = vld [vmem:[%s398 + $0x38] sm:$0xff]
        %v508 = vld [vmem:[%s398 + $0x40] sm:$0xff]
        %v509 = vld [vmem:[%s398 + $0x48] sm:$0xff]
        %v510 = vld [vmem:[%s398 + $0x50] sm:$0xff]
        %v511 = vld [vmem:[%s398 + $0x58] sm:$0xff]
        %v512 = vld [vmem:[%s398 + $0x60] sm:$0xff]
        %v513 = vld [vmem:[%s398 + $0x68] sm:$0xff]
        %v514 = vld [vmem:[%s398 + $0x70] sm:$0xff]
        %v515 = vld [vmem:[%s398 + $0x78] sm:$0xff]
        %v516 = vld [vmem:[%s398 + $0x80] sm:$0xff]
        %v517 = vld [vmem:[%s398 + $0x88] sm:$0xff]
        %v518 = vld [vmem:[%s398 + $0x90] sm:$0xff]
        %v519 = vld [vmem:[%s398 + $0x98] sm:$0xff]
        %v520 = vld [vmem:[%s398 + $0xa0] sm:$0xff]
        %v521 = vld [vmem:[%s398 + $0xa8] sm:$0xff]
        %v522 = vld [vmem:[%s398 + $0xb0] sm:$0xff]
        %v523 = vld [vmem:[%s398 + $0xb8] sm:$0xff]
        %v524 = vld [vmem:[%s398 + $0xc0] sm:$0xff]
        %v525 = vld [vmem:[%s398 + $0xc8] sm:$0xff]
        %v526 = vld [vmem:[%s398 + $0xd0] sm:$0xff]
        %v527 = vld [vmem:[%s398 + $0xd8] sm:$0xff]
        %v528 = vld [vmem:[%s398 + $0xe0] sm:$0xff]
        %v529 = vld [vmem:[%s398 + $0xe8] sm:$0xff]
        %v530 = vld [vmem:[%s398 + $0xf0] sm:$0xff]
        %v531 = vld [vmem:[%s398 + $0xf8] sm:$0xff]
        %v532 = vld [vmem:[%s407] sm:$0x1]
        %v534 = vperm.slane %v532, 0
        %536 = vmatpush.xpose.msra.mxu0 %v530
        %537 = vmatpush.xpose.msra.mxu0 %v528
        %538 = vmatpush.xpose.msra.mxu0 %v526
        %539 = vmatpush.xpose.msra.mxu0 %v524
        %540 = vmatpush.xpose.msra.mxu0 %v522
        %541 = vmatpush.xpose.msra.mxu0 %v520
        %542 = vmatpush.xpose.msra.mxu0 %v518
        %543 = vmatpush.xpose.msra.mxu0 %v516
        %544 = vmatpush.xpose.msra.mxu0 %v514
        %545 = vmatpush.xpose.msra.mxu0 %v512
        %546 = vmatpush.xpose.msra.mxu0 %v510
        %547 = vmatpush.xpose.msra.mxu0 %v508
        %548 = vmatpush.xpose.msra.mxu0 %v506
        %549 = vmatpush.xpose.msra.mxu0 %v504
        %550 = vmatpush.xpose.msra.mxu0 %v502
        %551 = vmatpush.xpose.msra.mxu0 %v500
        %552 = vmatmul.f32.gmra.mxu0 %v494
        %v553 = vpop.f32.mrf.mxu0
        %v554 = vadd.f32 %v534, %v553
        %555 = vdwg.mxu0
        %556 = vmatpush.xpose.msra.mxu0 %v531
        %557 = vmatpush.xpose.msra.mxu0 %v529
        %558 = vmatpush.xpose.msra.mxu0 %v527
        %559 = vmatpush.xpose.msra.mxu0 %v525
        %560 = vmatpush.xpose.msra.mxu0 %v523
        %561 = vmatpush.xpose.msra.mxu0 %v521
        %562 = vmatpush.xpose.msra.mxu0 %v519
        %563 = vmatpush.xpose.msra.mxu0 %v517
        %564 = vmatpush.xpose.msra.mxu0 %v515
        %565 = vmatpush.xpose.msra.mxu0 %v513
        %566 = vmatpush.xpose.msra.mxu0 %v511
        %567 = vmatpush.xpose.msra.mxu0 %v509
        %568 = vmatpush.xpose.msra.mxu0 %v507
        %569 = vmatpush.xpose.msra.mxu0 %v505
        %570 = vmatpush.xpose.msra.mxu0 %v503
        %571 = vmatpush.xpose.msra.mxu0 %v501
        %572 = vmatmul.f32.gmra.mxu0 %v495
        %v573 = vpop.f32.mrf.mxu0
        %v574 = vadd.f32 %v554, %v573
        %575 = vdwg.mxu0
        %v576 = vld [vmem:[%s417] sm:$0xff]
        %v577 = vadd.f32 %v576, %v574
        %vm578 = vcmp.ge.f32.partialorder %v577, 1.0
        %v579 = vsel %vm578, 1, 0
        %v580 = vcvt.s32.f32 %v579
        %v581 = vsub.f32 1.0, %v580
        %v582 = vmul.f32 %v577, %v581
        %583 = vst [vmem:[%s491] sm:$0xff] %v582
        %584 = vst [vmem:[%s470] sm:$0xff] %v580
        %v585 = vld [vmem:[%s427] sm:$0xff]
        %v586 = vmul.f32 %v585, 0.5
        %v587 = vadd.f32 %v586, %v580
        %588 = vst [vmem:[%s484] sm:$0xff] %v587
        %589 = vxpose.xlu0.b32.start [1/16] %v580, 128
        %590 = vxpose.xlu0.b32.cont [2/16] %v587, 128
        %591 = vxpose.xlu0.b32.cont [3/16] 0.0, 128
        %592 = vxpose.xlu0.b32.cont [4/16] 0.0, 128
        %593 = vxpose.xlu0.b32.cont [5/16] 0.0, 128
        %594 = vxpose.xlu0.b32.cont [6/16] 0.0, 128
        %595 = vxpose.xlu0.b32.cont [7/16] 0.0, 128
        %596 = vxpose.xlu0.b32.cont [8/16] 0.0, 128
        %597 = vxpose.xlu0.b32.cont [9/16] 0.0, 128
        %598 = vxpose.xlu0.b32.cont [10/16] 0.0, 128
        %599 = vxpose.xlu0.b32.cont [11/16] 0.0, 128
        %600 = vxpose.xlu0.b32.cont [12/16] 0.0, 128
        %601 = vxpose.xlu0.b32.cont [13/16] 0.0, 128
        %602 = vxpose.xlu0.b32.cont [14/16] 0.0, 128
        %603 = vxpose.xlu0.b32.cont [15/16] 0.0, 128
        %604 = vxpose.xlu0.b32.end [16/16] 0.0, 128
        %v605 = vpop.trf.xlu0
        %v606 = vpop.trf.xlu0
        %v607 = vpop.trf.xlu0
        %v608 = vpop.trf.xlu0
        %v609 = vpop.trf.xlu0
        %v610 = vpop.trf.xlu0
        %v611 = vpop.trf.xlu0
        %v612 = vpop.trf.xlu0
        %v613 = vpop.trf.xlu0
        %v614 = vpop.trf.xlu0
        %v615 = vpop.trf.xlu0
        %v616 = vpop.trf.xlu0
        %v617 = vpop.trf.xlu0
        %v618 = vpop.trf.xlu0
        %v619 = vpop.trf.xlu0
        %v620 = vpop.trf.xlu0
        %vm621 = vcmask 130048
        %v623 = vsel %vm621, %v605, 0
        %v626 = vsel %vm621, %v606, 0
        %v629 = vsel %vm621, %v607, 0
        %v632 = vsel %vm621, %v608, 0
        %v635 = vsel %vm621, %v609, 0
        %v638 = vsel %vm621, %v610, 0
        %v641 = vsel %vm621, %v611, 0
        %v644 = vsel %vm621, %v612, 0
        %v647 = vsel %vm621, %v613, 0
        %v650 = vsel %vm621, %v614, 0
        %v653 = vsel %vm621, %v615, 0
        %v656 = vsel %vm621, %v616, 0
        %v659 = vsel %vm621, %v617, 0
        %v662 = vsel %vm621, %v618, 0
        %v665 = vsel %vm621, %v619, 0
        %v668 = vsel %vm621, %v620, 0
        %670 = vmatpush.msra.mxu0 0.0
        %671 = vmatpush.msra.mxu0 0.0
        %672 = vmatpush.msra.mxu0 0.0
        %673 = vmatpush.msra.mxu0 0.0
        %674 = vmatpush.msra.mxu0 0.0
        %675 = vmatpush.msra.mxu0 0.0
        %676 = vmatpush.msra.mxu0 0.0
        %677 = vmatpush.msra.mxu0 0.0
        %678 = vmatpush.msra.mxu0 0.0
        %679 = vmatpush.msra.mxu0 0.0
        %680 = vmatpush.msra.mxu0 0.0
        %681 = vmatpush.msra.mxu0 0.0
        %682 = vmatpush.msra.mxu0 0.0
        %683 = vmatpush.msra.mxu0 0.0
        %684 = vmatpush.msra.mxu0 %v498
        %685 = vmatpush.msra.mxu0 %v496
        %686 = vmatmul.f32.gmra.mxu0 %v623
        %v687 = vpop.f32.mrf.mxu0
        %v688 = vadd.f32 0.0, %v687
        %689 = vmatmul.f32.gmra.mxu0 %v626
        %v690 = vpop.f32.mrf.mxu0
        %v691 = vadd.f32 0.0, %v690
        %692 = vmatmul.f32.gmra.mxu0 %v629
        %v693 = vpop.f32.mrf.mxu0
        %v694 = vadd.f32 0.0, %v693
        %695 = vmatmul.f32.gmra.mxu0 %v632
        %v696 = vpop.f32.mrf.mxu0
        %v697 = vadd.f32 0.0, %v696
        %698 = vmatmul.f32.gmra.mxu0 %v635
        %v699 = vpop.f32.mrf.mxu0
        %v700 = vadd.f32 0.0, %v699
        %701 = vmatmul.f32.gmra.mxu0 %v638
        %v702 = vpop.f32.mrf.mxu0
        %v703 = vadd.f32 0.0, %v702
        %704 = vmatmul.f32.gmra.mxu0 %v641
        %v705 = vpop.f32.mrf.mxu0
        %v706 = vadd.f32 0.0, %v705
        %707 = vmatmul.f32.gmra.mxu0 %v644
        %v708 = vpop.f32.mrf.mxu0
        %v709 = vadd.f32 0.0, %v708
        %710 = vmatmul.f32.gmra.mxu0 %v647
        %v711 = vpop.f32.mrf.mxu0
        %v712 = vadd.f32 0.0, %v711
        %713 = vmatmul.f32.gmra.mxu0 %v650
        %v714 = vpop.f32.mrf.mxu0
        %v715 = vadd.f32 0.0, %v714
        %716 = vmatmul.f32.gmra.mxu0 %v653
        %v717 = vpop.f32.mrf.mxu0
        %v718 = vadd.f32 0.0, %v717
        %719 = vmatmul.f32.gmra.mxu0 %v656
        %v720 = vpop.f32.mrf.mxu0
        %v721 = vadd.f32 0.0, %v720
        %722 = vmatmul.f32.gmra.mxu0 %v659
        %v723 = vpop.f32.mrf.mxu0
        %v724 = vadd.f32 0.0, %v723
        %725 = vmatmul.f32.gmra.mxu0 %v662
        %v726 = vpop.f32.mrf.mxu0
        %v727 = vadd.f32 0.0, %v726
        %728 = vmatmul.f32.gmra.mxu0 %v665
        %v729 = vpop.f32.mrf.mxu0
        %v730 = vadd.f32 0.0, %v729
        %731 = vmatmul.f32.gmra.mxu0 %v668
        %v732 = vpop.f32.mrf.mxu0
        %v733 = vadd.f32 0.0, %v732
        %734 = vdwg.mxu0
        %735 = vmatpush.msra.mxu0 0.0
        %736 = vmatpush.msra.mxu0 0.0
        %737 = vmatpush.msra.mxu0 0.0
        %738 = vmatpush.msra.mxu0 0.0
        %739 = vmatpush.msra.mxu0 0.0
        %740 = vmatpush.msra.mxu0 0.0
        %741 = vmatpush.msra.mxu0 0.0
        %742 = vmatpush.msra.mxu0 0.0
        %743 = vmatpush.msra.mxu0 0.0
        %744 = vmatpush.msra.mxu0 0.0
        %745 = vmatpush.msra.mxu0 0.0
        %746 = vmatpush.msra.mxu0 0.0
        %747 = vmatpush.msra.mxu0 0.0
        %748 = vmatpush.msra.mxu0 0.0
        %749 = vmatpush.msra.mxu0 %v499
        %750 = vmatpush.msra.mxu0 %v497
        %751 = vmatmul.f32.gmra.mxu0 %v623
        %v752 = vpop.f32.mrf.mxu0
        %v753 = vadd.f32 0.0, %v752
        %754 = vmatmul.f32.gmra.mxu0 %v626
        %v755 = vpop.f32.mrf.mxu0
        %v756 = vadd.f32 0.0, %v755
        %757 = vmatmul.f32.gmra.mxu0 %v629
        %v758 = vpop.f32.mrf.mxu0
        %v759 = vadd.f32 0.0, %v758
        %760 = vmatmul.f32.gmra.mxu0 %v632
        %v761 = vpop.f32.mrf.mxu0
        %v762 = vadd.f32 0.0, %v761
        %763 = vmatmul.f32.gmra.mxu0 %v635
        %v764 = vpop.f32.mrf.mxu0
        %v765 = vadd.f32 0.0, %v764
        %766 = vmatmul.f32.gmra.mxu0 %v638
        %v767 = vpop.f32.mrf.mxu0
        %v768 = vadd.f32 0.0, %v767
        %769 = vmatmul.f32.gmra.mxu0 %v641
        %v770 = vpop.f32.mrf.mxu0
        %v771 = vadd.f32 0.0, %v770
        %772 = vmatmul.f32.gmra.mxu0 %v644
        %v773 = vpop.f32.mrf.mxu0
        %v774 = vadd.f32 0.0, %v773
        %775 = vmatmul.f32.gmra.mxu0 %v647
        %v776 = vpop.f32.mrf.mxu0
        %v777 = vadd.f32 0.0, %v776
        %778 = vmatmul.f32.gmra.mxu0 %v650
        %v779 = vpop.f32.mrf.mxu0
        %v780 = vadd.f32 0.0, %v779
        %781 = vmatmul.f32.gmra.mxu0 %v653
        %v782 = vpop.f32.mrf.mxu0
        %v783 = vadd.f32 0.0, %v782
        %784 = vmatmul.f32.gmra.mxu0 %v656
        %v785 = vpop.f32.mrf.mxu0
        %v786 = vadd.f32 0.0, %v785
        %787 = vmatmul.f32.gmra.mxu0 %v659
        %v788 = vpop.f32.mrf.mxu0
        %v789 = vadd.f32 0.0, %v788
        %790 = vmatmul.f32.gmra.mxu0 %v662
        %v791 = vpop.f32.mrf.mxu0
        %v792 = vadd.f32 0.0, %v791
        %793 = vmatmul.f32.gmra.mxu0 %v665
        %v794 = vpop.f32.mrf.mxu0
        %v795 = vadd.f32 0.0, %v794
        %796 = vmatmul.f32.gmra.mxu0 %v668
        %v797 = vpop.f32.mrf.mxu0
        %v798 = vadd.f32 0.0, %v797
        %799 = vdwg.mxu0
        %v800 = vmax.f32 %v500, -1.0
        %v801 = vmax.f32 %v501, -1.0
        %v802 = vmax.f32 %v502, -1.0
        %v803 = vmax.f32 %v503, -1.0
        %v804 = vmax.f32 %v504, -1.0
        %v805 = vmax.f32 %v505, -1.0
        %v806 = vmax.f32 %v506, -1.0
        %v807 = vmax.f32 %v507, -1.0
        %v808 = vmax.f32 %v508, -1.0
        %v809 = vmax.f32 %v509, -1.0
        %v810 = vmax.f32 %v510, -1.0
        %v811 = vmax.f32 %v511, -1.0
        %v812 = vmax.f32 %v512, -1.0
        %v813 = vmax.f32 %v513, -1.0
        %v814 = vmax.f32 %v514, -1.0
        %v815 = vmax.f32 %v515, -1.0
        %v816 = vmax.f32 %v516, -1.0
        %v817 = vmax.f32 %v517, -1.0
        %v818 = vmax.f32 %v518, -1.0
        %v819 = vmax.f32 %v519, -1.0
        %v820 = vmax.f32 %v520, -1.0
        %v821 = vmax.f32 %v521, -1.0
        %v822 = vmax.f32 %v522, -1.0
        %v823 = vmax.f32 %v523, -1.0
        %v824 = vmax.f32 %v524, -1.0
        %v825 = vmax.f32 %v525, -1.0
        %v826 = vmax.f32 %v526, -1.0
        %v827 = vmax.f32 %v527, -1.0
        %v828 = vmax.f32 %v528, -1.0
        %v829 = vmax.f32 %v529, -1.0
        %v830 = vmax.f32 %v530, -1.0
        %v831 = vmax.f32 %v531, -1.0
        %v832 = vmin.f32 %v800, 1.0
        %v833 = vmin.f32 %v801, 1.0
        %v834 = vmin.f32 %v802, 1.0
        %v835 = vmin.f32 %v803, 1.0
        %v836 = vmin.f32 %v804, 1.0
        %v837 = vmin.f32 %v805, 1.0
        %v838 = vmin.f32 %v806, 1.0
        %v839 = vmin.f32 %v807, 1.0
        %v840 = vmin.f32 %v808, 1.0
        %v841 = vmin.f32 %v809, 1.0
        %v842 = vmin.f32 %v810, 1.0
        %v843 = vmin.f32 %v811, 1.0
        %v844 = vmin.f32 %v812, 1.0
        %v845 = vmin.f32 %v813, 1.0
        %v846 = vmin.f32 %v814, 1.0
        %v847 = vmin.f32 %v815, 1.0
        %v848 = vmin.f32 %v816, 1.0
        %v849 = vmin.f32 %v817, 1.0
        %v850 = vmin.f32 %v818, 1.0
        %v851 = vmin.f32 %v819, 1.0
        %v852 = vmin.f32 %v820, 1.0
        %v853 = vmin.f32 %v821, 1.0
        %v854 = vmin.f32 %v822, 1.0
        %v855 = vmin.f32 %v823, 1.0
        %v856 = vmin.f32 %v824, 1.0
        %v857 = vmin.f32 %v825, 1.0
        %v858 = vmin.f32 %v826, 1.0
        %v859 = vmin.f32 %v827, 1.0
        %v860 = vmin.f32 %v828, 1.0
        %v861 = vmin.f32 %v829, 1.0
        %v862 = vmin.f32 %v830, 1.0
        %v863 = vmin.f32 %v831, 1.0
        %v864 = vmul.f32 %v832, %v688
        %v865 = vmul.f32 %v833, %v753
        %v866 = vmul.f32 %v834, %v691
        %v867 = vmul.f32 %v835, %v756
        %v868 = vmul.f32 %v836, %v694
        %v869 = vmul.f32 %v837, %v759
        %v870 = vmul.f32 %v838, %v697
        %v871 = vmul.f32 %v839, %v762
        %v872 = vmul.f32 %v840, %v700
        %v873 = vmul.f32 %v841, %v765
        %v874 = vmul.f32 %v842, %v703
        %v875 = vmul.f32 %v843, %v768
        %v876 = vmul.f32 %v844, %v706
        %v877 = vmul.f32 %v845, %v771
        %v878 = vmul.f32 %v846, %v709
        %v879 = vmul.f32 %v847, %v774
        %v880 = vmul.f32 %v848, %v712
        %v881 = vmul.f32 %v849, %v777
        %v882 = vmul.f32 %v850, %v715
        %v883 = vmul.f32 %v851, %v780
        %v884 = vmul.f32 %v852, %v718
        %v885 = vmul.f32 %v853, %v783
        %v886 = vmul.f32 %v854, %v721
        %v887 = vmul.f32 %v855, %v786
        %v888 = vmul.f32 %v856, %v724
        %v889 = vmul.f32 %v857, %v789
        %v890 = vmul.f32 %v858, %v727
        %v891 = vmul.f32 %v859, %v792
        %v892 = vmul.f32 %v860, %v730
        %v893 = vmul.f32 %v861, %v795
        %v894 = vmul.f32 %v862, %v733
        %v895 = vmul.f32 %v863, %v798
        %896 = vst [vmem:[%s477] sm:$0xff] %v864
        %897 = vst [vmem:[%s477 + $0x8] sm:$0xff] %v865
        %898 = vst [vmem:[%s477 + $0x10] sm:$0xff] %v866
        %899 = vst [vmem:[%s477 + $0x18] sm:$0xff] %v867
        %900 = vst [vmem:[%s477 + $0x20] sm:$0xff] %v868
        %901 = vst [vmem:[%s477 + $0x28] sm:$0xff] %v869
        %902 = vst [vmem:[%s477 + $0x30] sm:$0xff] %v870
        %903 = vst [vmem:[%s477 + $0x38] sm:$0xff] %v871
        %904 = vst [vmem:[%s477 + $0x40] sm:$0xff] %v872
        %905 = vst [vmem:[%s477 + $0x48] sm:$0xff] %v873
        %906 = vst [vmem:[%s477 + $0x50] sm:$0xff] %v874
        %907 = vst [vmem:[%s477 + $0x58] sm:$0xff] %v875
        %908 = vst [vmem:[%s477 + $0x60] sm:$0xff] %v876
        %909 = vst [vmem:[%s477 + $0x68] sm:$0xff] %v877
        %910 = vst [vmem:[%s477 + $0x70] sm:$0xff] %v878
        %911 = vst [vmem:[%s477 + $0x78] sm:$0xff] %v879
        %912 = vst [vmem:[%s477 + $0x80] sm:$0xff] %v880
        %913 = vst [vmem:[%s477 + $0x88] sm:$0xff] %v881
        %914 = vst [vmem:[%s477 + $0x90] sm:$0xff] %v882
        %915 = vst [vmem:[%s477 + $0x98] sm:$0xff] %v883
        %916 = vst [vmem:[%s477 + $0xa0] sm:$0xff] %v884
        %917 = vst [vmem:[%s477 + $0xa8] sm:$0xff] %v885
        %918 = vst [vmem:[%s477 + $0xb0] sm:$0xff] %v886
        %919 = vst [vmem:[%s477 + $0xb8] sm:$0xff] %v887
        %920 = vst [vmem:[%s477 + $0xc0] sm:$0xff] %v888
        %921 = vst [vmem:[%s477 + $0xc8] sm:$0xff] %v889
        %922 = vst [vmem:[%s477 + $0xd0] sm:$0xff] %v890
        %923 = vst [vmem:[%s477 + $0xd8] sm:$0xff] %v891
        %924 = vst [vmem:[%s477 + $0xe0] sm:$0xff] %v892
        %925 = vst [vmem:[%s477 + $0xe8] sm:$0xff] %v893
        %926 = vst [vmem:[%s477 + $0xf0] sm:$0xff] %v894
        %927 = vst [vmem:[%s477 + $0xf8] sm:$0xff] %v895
        %s928 = sand.u32 %s193, 1
        %s929 = scalar_lea.sflag [#allocation4], %s928
        %s930 = sand.u32 %s193, 1
        %s931 = smul.addr %s930, 8
        %s932 = scalar_lea.vmem [#allocation10], %s931
        %s933 = sand.u32 %s39, 1
        %s934 = scalar_lea.sflag [#allocation12], %s933
        %s935 = sand.u32 %s219, 1
        %s936 = smul.addr %s935, 256
        %s937 = scalar_lea.vmem [#allocation11], %s936
        %s938 = sand.u32 %s39, 1
        %s939 = scalar_lea.sflag [#allocation12], %s938
        %s940 = sand.u32 %s245, 1
        %s941 = smul.addr %s940, 8
        %s942 = scalar_lea.vmem [#allocation13], %s941
        %s943 = sand.u32 %s271, 1
        %s944 = scalar_lea.sflag [#allocation15], %s943
        %s945 = sand.u32 %s271, 1
        %s946 = smul.addr %s945, 8
        %s947 = scalar_lea.vmem [#allocation14], %s946
        // Predicated region
        $region61: #{tpu_custom_call.1} parent=43 // pred_check
          %p948 = pneg %p203
        $region62: #{tpu_custom_call.1} parent=43 // pred_check_branch
          %950 = sbr.rel (%p948) target = $region64
        $region63: #{tpu_custom_call.1} parent=43 // pred_region
          %952 = vsyncadd %s929, 0
          %s953 = smul.addr %s39, 8
          %s954 = scalar_lea.hbm %s6, %s953
          %s956 = sshll.u32 %s932, 4
          %s957 = int_to_ptr.vmem [resolvable:$true] %s956
          %s958 = sshll.u32 %s954, 4
          %s959 = int_to_ptr.hbm [resolvable:$true] %s958
          %961 = dma.vmem_to_hbm [thread:$0]  %s957, 128, %s959, %s929
        $region64: #{tpu_custom_call.1} parent=43 // pred_fallthru
          _
        // Predicated region
        $region65: #{tpu_custom_call.1} parent=43 // pred_check
          %p962 = pneg %p229
        $region66: #{tpu_custom_call.1} parent=43 // pred_check_branch
          %964 = sbr.rel (%p962) target = $region68
        $region67: #{tpu_custom_call.1} parent=43 // pred_region
          %s965 = smul.u32 16, %s39
          %967 = vsyncadd %s934, 0
          %s968 = smul.addr %s965, 2
          %s969 = smul.addr %s968, 8
          %s970 = scalar_lea.hbm %s7, %s969
          %s971 = sshll.u32 %s937, 4
          %s972 = int_to_ptr.vmem [resolvable:$true] %s971
          %s973 = sshll.u32 %s970, 4
          %s974 = int_to_ptr.hbm [resolvable:$true] %s973
          %979 = dma.vmem_to_hbm [thread:$0]  %s972, 4096, %s974, %s934, 256, 256, 16
        $region68: #{tpu_custom_call.1} parent=43 // pred_fallthru
          _
        // Predicated region
        $region69: #{tpu_custom_call.1} parent=43 // pred_check
          %p980 = pneg %p255
        $region70: #{tpu_custom_call.1} parent=43 // pred_check_branch
          %982 = sbr.rel (%p980) target = $region72
        $region71: #{tpu_custom_call.1} parent=43 // pred_region
          %984 = vsyncadd %s939, 0
          %s985 = smul.addr %s39, 8
          %s986 = scalar_lea.hbm %s8, %s985
          %s988 = sshll.u32 %s942, 4
          %s989 = int_to_ptr.vmem [resolvable:$true] %s988
          %s990 = sshll.u32 %s986, 4
          %s991 = int_to_ptr.hbm [resolvable:$true] %s990
          %993 = dma.vmem_to_hbm [thread:$0]  %s989, 128, %s991, %s939
        $region72: #{tpu_custom_call.1} parent=43 // pred_fallthru
          _
        // Predicated region
        $region73: #{tpu_custom_call.1} parent=43 // pred_check
          %p994 = pneg %p281
        $region74: #{tpu_custom_call.1} parent=43 // pred_check_branch
          %996 = sbr.rel (%p994) target = $region76
        $region75: #{tpu_custom_call.1} parent=43 // pred_region
          %998 = vsyncadd %s944, 0
          %s999 = smul.addr %s39, 8
          %s1000 = scalar_lea.hbm %s9, %s999
          %s1002 = sshll.u32 %s947, 4
          %s1003 = int_to_ptr.vmem [resolvable:$true] %s1002
          %s1004 = sshll.u32 %s1000, 4
          %s1005 = int_to_ptr.hbm [resolvable:$true] %s1004
          %1007 = dma.vmem_to_hbm [thread:$0]  %s1003, 128, %s1005, %s944
        $region76: #{tpu_custom_call.1} parent=43 // pred_fallthru
          _
      $region44: #{tpu_custom_call.1} parent=5 // pred_fallthru
        _
      %p1008 = scmp.le.s32.totalorder 2, %s34
      // Predicated region
      $region77: #{tpu_custom_call.1} parent=5 // pred_check
        %p1009 = pneg %p1008
      $region78: #{tpu_custom_call.1} parent=5 // pred_check_branch
        %1011 = sbr.rel (%p1009) target = $region80
      $region79: #{tpu_custom_call.1} parent=5 // pred_region
        %s1012 = ssub.s32 %s34, 2
        // Predicated region
        $region81: #{tpu_custom_call.1} parent=79 // pred_check
          %p1013 = pneg %p209
        $region82: #{tpu_custom_call.1} parent=79 // pred_check_branch
          %1015 = sbr.rel (%p1013) target = $region84
        $region83: #{tpu_custom_call.1} parent=79 // pred_region
          %s1016 = sand.u32 %s194, 1
          %s1017 = scalar_lea.sflag [#allocation4], %s1016
          %s1018 = sand.u32 %s194, 1
          %s1019 = smul.addr %s1018, 8
          %s1020 = scalar_lea.vmem [#allocation10], %s1019
          %1022 = dma.done %s1017, 128
        $region84: #{tpu_custom_call.1} parent=79 // pred_fallthru
          _
        // Predicated region
        $region85: #{tpu_custom_call.1} parent=79 // pred_check
          %p1023 = pneg %p235
        $region86: #{tpu_custom_call.1} parent=79 // pred_check_branch
          %1025 = sbr.rel (%p1023) target = $region88
        $region87: #{tpu_custom_call.1} parent=79 // pred_region
          %s1026 = sand.u32 %s40, 1
          %s1027 = scalar_lea.sflag [#allocation12], %s1026
          %s1028 = sand.u32 %s220, 1
          %s1029 = smul.addr %s1028, 256
          %s1030 = scalar_lea.vmem [#allocation11], %s1029
          %1032 = dma.done %s1027, 4096
        $region88: #{tpu_custom_call.1} parent=79 // pred_fallthru
          _
        // Predicated region
        $region89: #{tpu_custom_call.1} parent=79 // pred_check
          %p1033 = pneg %p261
        $region90: #{tpu_custom_call.1} parent=79 // pred_check_branch
          %1035 = sbr.rel (%p1033) target = $region92
        $region91: #{tpu_custom_call.1} parent=79 // pred_region
          %s1036 = sand.u32 %s40, 1
          %s1037 = scalar_lea.sflag [#allocation12], %s1036
          %s1038 = sand.u32 %s246, 1
          %s1039 = smul.addr %s1038, 8
          %s1040 = scalar_lea.vmem [#allocation13], %s1039
          %1042 = dma.done %s1037, 128
        $region92: #{tpu_custom_call.1} parent=79 // pred_fallthru
          _
        // Predicated region
        $region93: #{tpu_custom_call.1} parent=79 // pred_check
          %p1043 = pneg %p287
        $region94: #{tpu_custom_call.1} parent=79 // pred_check_branch
          %1045 = sbr.rel (%p1043) target = $region96
        $region95: #{tpu_custom_call.1} parent=79 // pred_region
          %s1046 = sand.u32 %s272, 1
          %s1047 = scalar_lea.sflag [#allocation15], %s1046
          %s1048 = sand.u32 %s272, 1
          %s1049 = smul.addr %s1048, 8
          %s1050 = scalar_lea.vmem [#allocation14], %s1049
          %1052 = dma.done %s1047, 128
        $region96: #{tpu_custom_call.1} parent=79 // pred_fallthru
          _
      $region80: #{tpu_custom_call.1} parent=5 // pred_fallthru
        _
    $region6: #{tpu_custom_call.1} parent=1 // loop_footer
      %s38 = sadd.s32 1, %s34
    $region7: #{tpu_custom_call.1} parent=1 // loop_footer_branch
      %33 = sbr.rel target = $region3
    $region8: #{tpu_custom_call.1} parent=1 // loop_exit
      _
    %1053 = vsyncpa [#allocation3], 1
    %s1054 = scalar_lea.sflag [#allocation3], 1
    %1055 = vsyncpa %s1054, 1
    %1056 = vsyncpa [#allocation6], 1
    %s1057 = scalar_lea.sflag [#allocation6], 1
    %1058 = vsyncpa %s1057, 1
    %1059 = vsyncpa [#allocation9], 1
    %s1060 = scalar_lea.sflag [#allocation9], 1
    %1061 = vsyncpa %s1060, 1
    %1062 = vsyncpa [#allocation4], 1
    %s1063 = scalar_lea.sflag [#allocation4], 1
    %1064 = vsyncpa %s1063, 1
    %1065 = vsyncpa [#allocation12], 1
    %s1066 = scalar_lea.sflag [#allocation12], 1
    %1067 = vsyncpa %s1066, 1
    %1068 = vsyncpa [#allocation15], 1
    %s1069 = scalar_lea.sflag [#allocation15], 1
    %1070 = vsyncpa %s1069, 1

</llo_original>
